<compile_context>
chip_gen: v6e
topology: v6e:2x2x1
jax: 0.10.0
libtpu: 0.0.40
codegen_flags: <defaults>
</compile_context>

<pallas_src>
import functools

import jax
import jax.numpy as jnp
from jax.experimental import pallas as pl
from jax.experimental.pallas import tpu as pltpu

D_IN = 20        # original in_features
D_HID = 256      # hidden width
D_OUT = 10       # original out_features
K_PAD = 128      # lane-dense padded K (in_features)
N_PAD = 128      # lane-dense padded N (out_features)


def _round_up(x, m):
    return ((x + m - 1) // m) * m


def mlp_kernel(x_ref, w1_ref, b1_ref, w2_ref, b2_ref, o_ref):
    # hidden = relu(x @ W1 + b1)   -- x is (TM, 128), zero-padded in K
    h = jnp.dot(x_ref[...], w1_ref[...], preferred_element_type=jnp.float32)
    h = h + b1_ref[...]                      # (TM, 256) + (1, 256) broadcast
    h = jnp.maximum(h, 0.0)                  # ReLU (VPU)
    # out = hidden @ W2 + b2       -- W2/b2 zero-padded in N -> lane-dense store
    y = jnp.dot(h, w2_ref[...], preferred_element_type=jnp.float32)
    y = y + b2_ref[...]                      # (TM, 128) + (1, 128) broadcast
    o_ref[...] = y.astype(o_ref.dtype)


def pad_params(w1, b1, w2, b2):
    """Zero-pad params once, outside the kernel. Zeros contribute nothing."""
    w1_p = jnp.zeros((K_PAD, D_HID), jnp.float32).at[:D_IN, :].set(w1)
    b1_p = b1.reshape(1, D_HID).astype(jnp.float32)
    w2_p = jnp.zeros((D_HID, N_PAD), jnp.float32).at[:, :D_OUT].set(w2)
    b2_p = jnp.zeros((1, N_PAD), jnp.float32).at[:, :D_OUT].set(b2.reshape(1, D_OUT))
    return w1_p, b1_p, w2_p, b2_p


@functools.partial(jax.jit, static_argnames=("tm",))
def mlp_forward(x, w1_p, b1_p, w2_p, b2_p, *, tm=512):
    """x: (B, 20) f32. Params already padded via pad_params. Returns (B, 10)."""
    B = x.shape[0]
    # Biggest batch tile that fits VMEM comfortably on all generations, capped at `tm`.
    TM = min(tm, _round_up(B, 8))
    B_pad = _round_up(B, TM)
    grid_m = B_pad // TM

    # Zero-pad batch rows and K lanes (lane-dense (TM, 128) input blocks).
    x_p = jnp.zeros((B_pad, K_PAD), jnp.float32).at[:B, :D_IN].set(x)

    flops = 2 * B_pad * (K_PAD * D_HID + D_HID * N_PAD)
    bytes_accessed = 4 * (B_pad * K_PAD + K_PAD * D_HID + D_HID
                          + D_HID * N_PAD + N_PAD + B_pad * N_PAD)

    out = pl.pallas_call(
        mlp_kernel,
        out_shape=jax.ShapeDtypeStruct((B_pad, N_PAD), jnp.float32),
        grid_spec=pl.GridSpec(
            grid=(grid_m,),
            in_specs=[
                pl.BlockSpec((TM, K_PAD), lambda i: (i, 0)),     # x tile
                pl.BlockSpec((K_PAD, D_HID), lambda i: (0, 0)),  # W1 (VMEM-resident)
                pl.BlockSpec((1, D_HID), lambda i: (0, 0)),      # b1 (VMEM-resident)
                pl.BlockSpec((D_HID, N_PAD), lambda i: (0, 0)),  # W2 (VMEM-resident)
                pl.BlockSpec((1, N_PAD), lambda i: (0, 0)),      # b2 (VMEM-resident)
            ],
            out_specs=pl.BlockSpec((TM, N_PAD), lambda i: (i, 0)),
        ),
        compiler_params=pltpu.CompilerParams(
            # Batch tiles are independent -> shard across both TCs on v7x.
            dimension_semantics=("parallel",)),
        cost_estimate=pl.CostEstimate(
            flops=flops, transcendentals=0, bytes_accessed=bytes_accessed),
    )(x_p, w1_p, b1_p, w2_p, b2_p)

    # Drop batch padding and padded output lanes.
    return out[:B, :D_OUT]


def init_params(key):
    # Deterministic init mirroring nn.Linear's U(-1/sqrt(fan_in), 1/sqrt(fan_in)).
    k1, k2, k3, k4 = jax.random.split(key, 4)
    bound1 = 1.0 / jnp.sqrt(D_IN)
    bound2 = 1.0 / jnp.sqrt(D_HID)
    # Stored as (in, out): transpose of PyTorch's (out, in) so kernel does x @ W.
    w1 = jax.random.uniform(k1, (D_IN, D_HID), jnp.float32, -bound1, bound1)
    b1 = jax.random.uniform(k2, (D_HID,), jnp.float32, -bound1, bound1)
    w2 = jax.random.uniform(k3, (D_HID, D_OUT), jnp.float32, -bound2, bound2)
    b2 = jax.random.uniform(k4, (D_OUT,), jnp.float32, -bound2, bound2)
    return w1, b1, w2, b2


if __name__ == "__main__":
    key = jax.random.PRNGKey(0)
    kx, kp = jax.random.split(key)
    batch = 8
    x = jax.random.normal(kx, (batch, D_IN), jnp.float32)
    w1, b1, w2, b2 = init_params(kp)

    w1_p, b1_p, w2_p, b2_p = pad_params(w1, b1, w2, b2)
    out = mlp_forward(x, w1_p, b1_p, w2_p, b2_p)
    out = jax.block_until_ready(out)

    # Pure-JAX reference check of forward semantics (unpadded math).
    ref = jnp.maximum(x @ w1 + b1.reshape(1, -1), 0.0) @ w2 + b2.reshape(1, -1)
    assert out.shape == (batch, D_OUT)
    assert jnp.allclose(out, ref, atol=1e-4, rtol=1e-4)

    print("KERNEL_OK")
</pallas_src>

<mosaic_0001>
module attributes {stable_mosaic.version = 11 : i64} {
  func.func @mlp_kernel(%arg0: i32, %arg1: memref<8x128xf32, #tpu.memory_space<vmem>>, %arg2: memref<128x256xf32, #tpu.memory_space<vmem>>, %arg3: memref<1x256xf32, #tpu.memory_space<vmem>>, %arg4: memref<256x128xf32, #tpu.memory_space<vmem>>, %arg5: memref<1x128xf32, #tpu.memory_space<vmem>>, %arg6: memref<8x128xf32, #tpu.memory_space<vmem>>) attributes {dimension_semantics = [#tpu.dimension_semantics<parallel>], iteration_bounds = array<i64: 1>, scalar_prefetch = 0 : i64, scratch_operands = 0 : i64, tpu.core_type = #tpu.core_type<tc>, window_params = [{transform_indices = @transform_0, window_bounds = array<i64: 8, 128>}, {pipeline_mode = #tpu.pipeline_mode<synchronous>, transform_indices = @transform_1, window_bounds = array<i64: 128, 256>}, {pipeline_mode = #tpu.pipeline_mode<synchronous>, transform_indices = @transform_2, window_bounds = array<i64: 1, 256>}, {pipeline_mode = #tpu.pipeline_mode<synchronous>, transform_indices = @transform_3, window_bounds = array<i64: 256, 128>}, {pipeline_mode = #tpu.pipeline_mode<synchronous>, transform_indices = @transform_4, window_bounds = array<i64: 1, 128>}, {transform_indices = @transform_5, window_bounds = array<i64: 8, 128>}]} {
    %c0 = arith.constant 0 : index
    %c0_0 = arith.constant 0 : index
    %0 = vector.load %arg1[%c0, %c0_0] : memref<8x128xf32, #tpu.memory_space<vmem>>, vector<8x128xf32>
    %c0_1 = arith.constant 0 : index
    %c0_2 = arith.constant 0 : index
    %1 = vector.load %arg2[%c0_1, %c0_2] : memref<128x256xf32, #tpu.memory_space<vmem>>, vector<128x256xf32>
    %cst = arith.constant dense<0.000000e+00> : vector<8x256xf32>
    %2 = tpu.matmul %0, %1, %cst {dimension_numbers = #tpu.dot_dimension_numbers<[1], [0], [0], [1], [0, 0, 1, 1], [], []>} : vector<8x128xf32>, vector<128x256xf32>, vector<8x256xf32> -> vector<8x256xf32>
    %c0_3 = arith.constant 0 : index
    %c0_4 = arith.constant 0 : index
    %3 = vector.load %arg3[%c0_3, %c0_4] : memref<1x256xf32, #tpu.memory_space<vmem>>, vector<1x256xf32>
    %4 = vector.broadcast %3 : vector<1x256xf32> to vector<8x256xf32>
    %5 = arith.addf %2, %4 : vector<8x256xf32>
    %cst_5 = arith.constant 0.000000e+00 : f32
    %6 = vector.broadcast %cst_5 : f32 to vector<8x256xf32>
    %7 = arith.maximumf %5, %6 : vector<8x256xf32>
    %c0_6 = arith.constant 0 : index
    %c0_7 = arith.constant 0 : index
    %8 = vector.load %arg4[%c0_6, %c0_7] : memref<256x128xf32, #tpu.memory_space<vmem>>, vector<256x128xf32>
    %cst_8 = arith.constant dense<0.000000e+00> : vector<8x128xf32>
    %9 = tpu.matmul %7, %8, %cst_8 {dimension_numbers = #tpu.dot_dimension_numbers<[1], [0], [0], [1], [0, 0, 1, 1], [], []>} : vector<8x256xf32>, vector<256x128xf32>, vector<8x128xf32> -> vector<8x128xf32>
    %c0_9 = arith.constant 0 : index
    %c0_10 = arith.constant 0 : index
    %10 = vector.load %arg5[%c0_9, %c0_10] : memref<1x128xf32, #tpu.memory_space<vmem>>, vector<1x128xf32>
    %11 = vector.broadcast %10 : vector<1x128xf32> to vector<8x128xf32>
    %12 = arith.addf %9, %11 : vector<8x128xf32>
    %c0_11 = arith.constant 0 : index
    %c0_12 = arith.constant 0 : index
    %13 = vector.load %arg6[%c0_11, %c0_12] : memref<8x128xf32, #tpu.memory_space<vmem>>, vector<8x128xf32>
    tpu.vector_store %arg6[%c0_11, %c0_12], %12 {strides = array<i32>} : memref<8x128xf32, #tpu.memory_space<vmem>>, vector<8x128xf32>,
    return
  }
  func.func @transform_0(%arg0: i32) -> (i32, i32) {
    %c0_i32 = arith.constant 0 : i32
    %c0_i32_0 = arith.constant 0 : i32
    return %arg0, %c0_i32 : i32, i32
  }
  func.func @transform_1(%arg0: i32) -> (i32, i32) {
    %c0_i32 = arith.constant 0 : i32
    %c0_i32_0 = arith.constant 0 : i32
    %c0_i32_1 = arith.constant 0 : i32
    return %c0_i32, %c0_i32_0 : i32, i32
  }
  func.func @transform_2(%arg0: i32) -> (i32, i32) {
    %c0_i32 = arith.constant 0 : i32
    %c0_i32_0 = arith.constant 0 : i32
    %c0_i32_1 = arith.constant 0 : i32
    return %c0_i32, %c0_i32_0 : i32, i32
  }
  func.func @transform_3(%arg0: i32) -> (i32, i32) {
    %c0_i32 = arith.constant 0 : i32
    %c0_i32_0 = arith.constant 0 : i32
    %c0_i32_1 = arith.constant 0 : i32
    return %c0_i32, %c0_i32_0 : i32, i32
  }
  func.func @transform_4(%arg0: i32) -> (i32, i32) {
    %c0_i32 = arith.constant 0 : i32
    %c0_i32_0 = arith.constant 0 : i32
    %c0_i32_1 = arith.constant 0 : i32
    return %c0_i32, %c0_i32_0 : i32, i32
  }
  func.func @transform_5(%arg0: i32) -> (i32, i32) {
    %c0_i32 = arith.constant 0 : i32
    %c0_i32_0 = arith.constant 0 : i32
    return %arg0, %c0_i32 : i32, i32
  }
}

</mosaic_0001>

<llo_original>
// kernel: mlp_forward.1
$region0: #{mlp_forward.1}
  #allocation0 [shape = 'u32[]', space=smem, size = 0x4, offset = 0x4, fixed_abs, tag = 'smem constant byte address 0x4 - core index']
  #allocation1 [shape = 'u32[144,128]{1,0:T(1,128)}', space=vmem, size = 0x12000, scoped, tag = 'internal scratch']
  %s0 = inlined_call_operand.vmem [shape: f32[8,128], index: 0, kind: input, shape index: {}]
  %s1 = inlined_call_operand.hbm [shape: f32[128,256], index: 1, kind: input, shape index: {}]
  %s2 = inlined_call_operand.vmem [shape: f32[1,256], index: 2, kind: input, shape index: {}]
  %s3 = inlined_call_operand.hbm [shape: f32[256,128], index: 3, kind: input, shape index: {}]
  %s4 = inlined_call_operand.vmem [shape: f32[1,128], index: 4, kind: input, shape index: {}]
  %s5 = inlined_call_operand.hbm [shape: f32[8,128], index: 5, kind: output, shape index: {}]
  %s6 = sld [smem:[#allocation0]]
  $region38: #{mlp_forward.1} parent=0
    _
  %s8 = ssub.s32 1, %s6
  %s9 = scalar_select 0, %s8, %s6
  $region1: #{mlp_forward.1} parent=0
    #allocation2 [shape = 'u8[131072]{0}', space=vmem, size = 0x20000, scoped, tag = 'input window, operand 1, single buffered']
    #allocation3 [shape = 's32[1]{0}', space=sflag, size = 0x4, scoped, tag = 'scoped memory for mlp_forward.1']
    #allocation4 [shape = 's32[1]{0}', space=sflag, size = 0x4, scoped, tag = 'scoped memory for mlp_forward.1']
    #allocation5 [shape = 'u8[131072]{0}', space=vmem, size = 0x20000, scoped, tag = 'input window, operand 3, single buffered']
    #allocation6 [shape = 's32[1]{0}', space=sflag, size = 0x4, scoped, tag = 'scoped memory for mlp_forward.1']
    #allocation7 [shape = 'u8[4096]{0}', space=vmem, size = 0x1000, scoped, tag = 'output window, operand 0, single buffered']
    %10 = vsyncpa [#allocation3], 0
    %11 = vsyncpa [#allocation6], 0
    %12 = vsyncpa [#allocation4], 0
    // Predicated region
    $region2: #{mlp_forward.1} parent=1 // pred_check
      _
    $region3: #{mlp_forward.1} parent=1 // pred_check_branch
      %14 = sbr.rel (0) target = $region5
    $region4: #{mlp_forward.1} parent=1 // pred_region
      _
    $region5: #{mlp_forward.1} parent=1 // pred_fallthru
      _
    // Predicated region
    $region6: #{mlp_forward.1} parent=1 // pred_check
      _
    $region7: #{mlp_forward.1} parent=1 // pred_check_branch
      %16 = sbr.rel (0) target = $region9
    $region8: #{mlp_forward.1} parent=1 // pred_region
      %s18 = ssub.s32 4096, 4096
      %19 = vsyncadd [#allocation3], %s18
      %s20 = sshll.u32 [#allocation2], 4
      %s21 = int_to_ptr.vmem [resolvable:$true] %s20
      %26 = dma.hbm_to_vmem [thread:$0]  %s1, 4096, %s21, [#allocation3], 256, 256, 16
    $region9: #{mlp_forward.1} parent=1 // pred_fallthru
      _
    // Predicated region
    $region10: #{mlp_forward.1} parent=1 // pred_check
      _
    $region11: #{mlp_forward.1} parent=1 // pred_check_branch
      %28 = sbr.rel (0) target = $region13
    $region12: #{mlp_forward.1} parent=1 // pred_region
      _
    $region13: #{mlp_forward.1} parent=1 // pred_fallthru
      _
    // Predicated region
    $region14: #{mlp_forward.1} parent=1 // pred_check
      _
    $region15: #{mlp_forward.1} parent=1 // pred_check_branch
      %30 = sbr.rel (0) target = $region17
    $region16: #{mlp_forward.1} parent=1 // pred_region
      %s32 = ssub.s32 4096, 4096
      %33 = vsyncadd [#allocation6], %s32
      %s34 = sshll.u32 [#allocation5], 4
      %s35 = int_to_ptr.vmem [resolvable:$true] %s34
      %40 = dma.hbm_to_vmem [thread:$0]  %s3, 4096, %s35, [#allocation6], 128, 128, 8
    $region17: #{mlp_forward.1} parent=1 // pred_fallthru
      _
    // Predicated region
    $region18: #{mlp_forward.1} parent=1 // pred_check
      _
    $region19: #{mlp_forward.1} parent=1 // pred_check_branch
      %42 = sbr.rel (0) target = $region21
    $region20: #{mlp_forward.1} parent=1 // pred_region
      _
    $region21: #{mlp_forward.1} parent=1 // pred_fallthru
      _
    // Predicated region
    $region22: #{mlp_forward.1} parent=1 // pred_check
      _
    $region23: #{mlp_forward.1} parent=1 // pred_check_branch
      %44 = sbr.rel (0) target = $region25
    $region24: #{mlp_forward.1} parent=1 // pred_region
      %45 = dma.done [#allocation3], 4096
    $region25: #{mlp_forward.1} parent=1 // pred_fallthru
      _
    // Predicated region
    $region26: #{mlp_forward.1} parent=1 // pred_check
      _
    $region27: #{mlp_forward.1} parent=1 // pred_check_branch
      %47 = sbr.rel (0) target = $region29
    $region28: #{mlp_forward.1} parent=1 // pred_region
      %48 = dma.done [#allocation6], 4096
    $region29: #{mlp_forward.1} parent=1 // pred_fallthru
      _
    %v49 = vld [vmem:[%s0] sm:$0xff]
    %v50 = vld [vmem:[#allocation2] sm:$0xff]
    %v51 = vld [vmem:[#allocation2 + $0x8] sm:$0xff]
    %v52 = vld [vmem:[#allocation2 + $0x10] sm:$0xff]
    %v53 = vld [vmem:[#allocation2 + $0x18] sm:$0xff]
    %v54 = vld [vmem:[#allocation2 + $0x20] sm:$0xff]
    %v55 = vld [vmem:[#allocation2 + $0x28] sm:$0xff]
    %v56 = vld [vmem:[#allocation2 + $0x30] sm:$0xff]
    %v57 = vld [vmem:[#allocation2 + $0x38] sm:$0xff]
    %v58 = vld [vmem:[#allocation2 + $0x40] sm:$0xff]
    %v59 = vld [vmem:[#allocation2 + $0x48] sm:$0xff]
    %v60 = vld [vmem:[#allocation2 + $0x50] sm:$0xff]
    %v61 = vld [vmem:[#allocation2 + $0x58] sm:$0xff]
    %v62 = vld [vmem:[#allocation2 + $0x60] sm:$0xff]
    %v63 = vld [vmem:[#allocation2 + $0x68] sm:$0xff]
    %v64 = vld [vmem:[#allocation2 + $0x70] sm:$0xff]
    %v65 = vld [vmem:[#allocation2 + $0x78] sm:$0xff]
    %v66 = vld [vmem:[#allocation2 + $0x80] sm:$0xff]
    %v67 = vld [vmem:[#allocation2 + $0x88] sm:$0xff]
    %v68 = vld [vmem:[#allocation2 + $0x90] sm:$0xff]
    %v69 = vld [vmem:[#allocation2 + $0x98] sm:$0xff]
    %v70 = vld [vmem:[#allocation2 + $0xa0] sm:$0xff]
    %v71 = vld [vmem:[#allocation2 + $0xa8] sm:$0xff]
    %v72 = vld [vmem:[#allocation2 + $0xb0] sm:$0xff]
    %v73 = vld [vmem:[#allocation2 + $0xb8] sm:$0xff]
    %v74 = vld [vmem:[#allocation2 + $0xc0] sm:$0xff]
    %v75 = vld [vmem:[#allocation2 + $0xc8] sm:$0xff]
    %v76 = vld [vmem:[#allocation2 + $0xd0] sm:$0xff]
    %v77 = vld [vmem:[#allocation2 + $0xd8] sm:$0xff]
    %v78 = vld [vmem:[#allocation2 + $0xe0] sm:$0xff]
    %v79 = vld [vmem:[#allocation2 + $0xe8] sm:$0xff]
    %v80 = vld [vmem:[#allocation2 + $0xf0] sm:$0xff]
    %v81 = vld [vmem:[#allocation2 + $0xf8] sm:$0xff]
    %v82 = vld [vmem:[%s2] sm:$0x3]
    %v84 = vlaneseq
    %v85 = vshrl.u32 %v84, 7
    %v86 = vsub.s32 0, %v85
    %v87 = vrot.slane %v82, %v86
    %v88 = vlaneseq
    %v89 = vshrl.u32 %v88, 7
    %v90 = vsub.s32 1, %v89
    %v91 = vrot.slane %v82, %v90
    %94 = vmatprep.subr.mxu0 %v81
    %95 = vmatpush1.msra.mxu0 %v80
    %96 = vmatprep.subr.mxu0 %v79
    %97 = vmatpush1.msra.mxu0 %v78
    %98 = vmatprep.subr.mxu0 %v77
    %99 = vmatpush1.msra.mxu0 %v76
    %100 = vmatprep.subr.mxu0 %v75
    %101 = vmatpush1.msra.mxu0 %v74
    %102 = vmatprep.subr.mxu0 %v73
    %103 = vmatpush1.msra.mxu0 %v72
    %104 = vmatprep.subr.mxu0 %v71
    %105 = vmatpush1.msra.mxu0 %v70
    %106 = vmatprep.subr.mxu0 %v69
    %107 = vmatpush1.msra.mxu0 %v68
    %108 = vmatprep.subr.mxu0 %v67
    %109 = vmatpush1.msra.mxu0 %v66
    %110 = vmatprep.subr.mxu0 %v65
    %111 = vmatpush1.msra.mxu0 %v64
    %112 = vmatprep.subr.mxu0 %v63
    %113 = vmatpush1.msra.mxu0 %v62
    %114 = vmatprep.subr.mxu0 %v61
    %115 = vmatpush1.msra.mxu0 %v60
    %116 = vmatprep.subr.mxu0 %v59
    %117 = vmatpush1.msra.mxu0 %v58
    %118 = vmatprep.subr.mxu0 %v57
    %119 = vmatpush1.msra.mxu0 %v56
    %120 = vmatprep.subr.mxu0 %v55
    %121 = vmatpush1.msra.mxu0 %v54
    %122 = vmatprep.subr.mxu0 %v53
    %123 = vmatpush1.msra.mxu0 %v52
    %124 = vmatprep.subr.mxu0 %v51
    %125 = vmatpush1.msra.mxu0 %v50
    %126 = vmatprep.subr.mxu0 0.0
    %127 = vmatpush2.msra.mxu0 0.0
    %128 = vmatprep.subr.mxu0 0.0
    %129 = vmatpush2.msra.mxu0 0.0
    %130 = vmatprep.subr.mxu0 0.0
    %131 = vmatpush2.msra.mxu0 0.0
    %132 = vmatprep.subr.mxu0 0.0
    %133 = vmatpush2.msra.mxu0 0.0
    %134 = vmatprep.subr.mxu0 0.0
    %135 = vmatpush2.msra.mxu0 0.0
    %136 = vmatprep.subr.mxu0 0.0
    %137 = vmatpush2.msra.mxu0 0.0
    %138 = vmatprep.subr.mxu0 0.0
    %139 = vmatpush2.msra.mxu0 0.0
    %140 = vmatprep.subr.mxu0 0.0
    %141 = vmatpush2.msra.mxu0 0.0
    %142 = vmatprep.subr.mxu0 0.0
    %143 = vmatpush2.msra.mxu0 0.0
    %144 = vmatprep.subr.mxu0 0.0
    %145 = vmatpush2.msra.mxu0 0.0
    %146 = vmatprep.subr.mxu0 0.0
    %147 = vmatpush2.msra.mxu0 0.0
    %148 = vmatprep.subr.mxu0 0.0
    %149 = vmatpush2.msra.mxu0 0.0
    %150 = vmatprep.subr.mxu0 0.0
    %151 = vmatpush2.msra.mxu0 0.0
    %152 = vmatprep.subr.mxu0 0.0
    %153 = vmatpush2.msra.mxu0 0.0
    %154 = vmatprep.subr.mxu0 0.0
    %155 = vmatpush2.msra.mxu0 0.0
    %156 = vmatprep.subr.mxu0 0.0
    %157 = vmatpush2.msra.mxu0 0.0
    %158 = vmatprep.mubr.f32.mxu0 0.0
    %159 = vmatmul.mubr.f32.gmra.mxu0 %v49
    %v160 = vpop.f32.mrf.mxu0
    %v161 = vadd.f32 %v87, %v160
    %v162 = vpop.f32.mrf.mxu0
    %v163 = vadd.f32 %v91, %v162
    %164 = vdwg.mxu0
    %v165 = vmax.f32 %v161, 0.0
    %v166 = vmax.f32 %v163, 0.0
    %v167 = vld [vmem:[#allocation5] sm:$0xff]
    %v168 = vld [vmem:[#allocation5 + $0x8] sm:$0xff]
    %v169 = vld [vmem:[#allocation5 + $0x10] sm:$0xff]
    %v170 = vld [vmem:[#allocation5 + $0x18] sm:$0xff]
    %v171 = vld [vmem:[#allocation5 + $0x20] sm:$0xff]
    %v172 = vld [vmem:[#allocation5 + $0x28] sm:$0xff]
    %v173 = vld [vmem:[#allocation5 + $0x30] sm:$0xff]
    %v174 = vld [vmem:[#allocation5 + $0x38] sm:$0xff]
    %v175 = vld [vmem:[#allocation5 + $0x40] sm:$0xff]
    %v176 = vld [vmem:[#allocation5 + $0x48] sm:$0xff]
    %v177 = vld [vmem:[#allocation5 + $0x50] sm:$0xff]
    %v178 = vld [vmem:[#allocation5 + $0x58] sm:$0xff]
    %v179 = vld [vmem:[#allocation5 + $0x60] sm:$0xff]
    %v180 = vld [vmem:[#allocation5 + $0x68] sm:$0xff]
    %v181 = vld [vmem:[#allocation5 + $0x70] sm:$0xff]
    %v182 = vld [vmem:[#allocation5 + $0x78] sm:$0xff]
    %v183 = vld [vmem:[#allocation5 + $0x80] sm:$0xff]
    %v184 = vld [vmem:[#allocation5 + $0x88] sm:$0xff]
    %v185 = vld [vmem:[#allocation5 + $0x90] sm:$0xff]
    %v186 = vld [vmem:[#allocation5 + $0x98] sm:$0xff]
    %v187 = vld [vmem:[#allocation5 + $0xa0] sm:$0xff]
    %v188 = vld [vmem:[#allocation5 + $0xa8] sm:$0xff]
    %v189 = vld [vmem:[#allocation5 + $0xb0] sm:$0xff]
    %v190 = vld [vmem:[#allocation5 + $0xb8] sm:$0xff]
    %v191 = vld [vmem:[#allocation5 + $0xc0] sm:$0xff]
    %v192 = vld [vmem:[#allocation5 + $0xc8] sm:$0xff]
    %v193 = vld [vmem:[#allocation5 + $0xd0] sm:$0xff]
    %v194 = vld [vmem:[#allocation5 + $0xd8] sm:$0xff]
    %v195 = vld [vmem:[#allocation5 + $0xe0] sm:$0xff]
    %v196 = vld [vmem:[#allocation5 + $0xe8] sm:$0xff]
    %v197 = vld [vmem:[#allocation5 + $0xf0] sm:$0xff]
    %v198 = vld [vmem:[#allocation5 + $0xf8] sm:$0xff]
    %v199 = vld [vmem:[%s4] sm:$0x1]
    %v201 = vlaneseq
    %v202 = vshrl.u32 %v201, 7
    %v203 = vsub.s32 0, %v202
    %v204 = vrot.slane %v199, %v203
    %206 = vmatprep.subr.mxu0 0.0
    %207 = vmatpush1.msra.mxu0 %v182
    %208 = vmatprep.subr.mxu0 0.0
    %209 = vmatpush1.msra.mxu0 %v181
    %210 = vmatprep.subr.mxu0 0.0
    %211 = vmatpush1.msra.mxu0 %v180
    %212 = vmatprep.subr.mxu0 0.0
    %213 = vmatpush1.msra.mxu0 %v179
    %214 = vmatprep.subr.mxu0 0.0
    %215 = vmatpush1.msra.mxu0 %v178
    %216 = vmatprep.subr.mxu0 0.0
    %217 = vmatpush1.msra.mxu0 %v177
    %218 = vmatprep.subr.mxu0 0.0
    %219 = vmatpush1.msra.mxu0 %v176
    %220 = vmatprep.subr.mxu0 0.0
    %221 = vmatpush1.msra.mxu0 %v175
    %222 = vmatprep.subr.mxu0 0.0
    %223 = vmatpush1.msra.mxu0 %v174
    %224 = vmatprep.subr.mxu0 0.0
    %225 = vmatpush1.msra.mxu0 %v173
    %226 = vmatprep.subr.mxu0 0.0
    %227 = vmatpush1.msra.mxu0 %v172
    %228 = vmatprep.subr.mxu0 0.0
    %229 = vmatpush1.msra.mxu0 %v171
    %230 = vmatprep.subr.mxu0 0.0
    %231 = vmatpush1.msra.mxu0 %v170
    %232 = vmatprep.subr.mxu0 0.0
    %233 = vmatpush1.msra.mxu0 %v169
    %234 = vmatprep.subr.mxu0 0.0
    %235 = vmatpush1.msra.mxu0 %v168
    %236 = vmatprep.subr.mxu0 0.0
    %237 = vmatpush1.msra.mxu0 %v167
    %238 = vmatprep.subr.mxu0 0.0
    %239 = vmatpush2.msra.mxu0 %v198
    %240 = vmatprep.subr.mxu0 0.0
    %241 = vmatpush2.msra.mxu0 %v197
    %242 = vmatprep.subr.mxu0 0.0
    %243 = vmatpush2.msra.mxu0 %v196
    %244 = vmatprep.subr.mxu0 0.0
    %245 = vmatpush2.msra.mxu0 %v195
    %246 = vmatprep.subr.mxu0 0.0
    %247 = vmatpush2.msra.mxu0 %v194
    %248 = vmatprep.subr.mxu0 0.0
    %249 = vmatpush2.msra.mxu0 %v193
    %250 = vmatprep.subr.mxu0 0.0
    %251 = vmatpush2.msra.mxu0 %v192
    %252 = vmatprep.subr.mxu0 0.0
    %253 = vmatpush2.msra.mxu0 %v191
    %254 = vmatprep.subr.mxu0 0.0
    %255 = vmatpush2.msra.mxu0 %v190
    %256 = vmatprep.subr.mxu0 0.0
    %257 = vmatpush2.msra.mxu0 %v189
    %258 = vmatprep.subr.mxu0 0.0
    %259 = vmatpush2.msra.mxu0 %v188
    %260 = vmatprep.subr.mxu0 0.0
    %261 = vmatpush2.msra.mxu0 %v187
    %262 = vmatprep.subr.mxu0 0.0
    %263 = vmatpush2.msra.mxu0 %v186
    %264 = vmatprep.subr.mxu0 0.0
    %265 = vmatpush2.msra.mxu0 %v185
    %266 = vmatprep.subr.mxu0 0.0
    %267 = vmatpush2.msra.mxu0 %v184
    %268 = vmatprep.subr.mxu0 0.0
    %269 = vmatpush2.msra.mxu0 %v183
    %270 = vmatprep.mubr.f32.mxu0 %v166
    %271 = vmatmul.mubr.f32.gmra.mxu0 %v165
    %v272 = vpop.f32.mrf.mxu0
    %v273 = vadd.f32 %v204, %v272
    %v274 = vpop.f32.mrf.mxu0
    %275 = vdwg.mxu0
    %276 = vst [vmem:[#allocation7] sm:$0xff] %v273
    // Predicated region
    $region30: #{mlp_forward.1} parent=1 // pred_check
      _
    $region31: #{mlp_forward.1} parent=1 // pred_check_branch
      %278 = sbr.rel (0) target = $region33
    $region32: #{mlp_forward.1} parent=1 // pred_region
      %s280 = ssub.s32 128, 128
      %281 = vsyncadd [#allocation4], %s280
      %s283 = sshll.u32 [#allocation7], 4
      %s284 = int_to_ptr.vmem [resolvable:$true] %s283
      %286 = dma.vmem_to_hbm [thread:$0]  %s284, 128, %s5, [#allocation4]
    $region33: #{mlp_forward.1} parent=1 // pred_fallthru
      _
    // Predicated region
    $region34: #{mlp_forward.1} parent=1 // pred_check
      _
    $region35: #{mlp_forward.1} parent=1 // pred_check_branch
      %288 = sbr.rel (0) target = $region37
    $region36: #{mlp_forward.1} parent=1 // pred_region
      %289 = dma.done [#allocation4], 128
    $region37: #{mlp_forward.1} parent=1 // pred_fallthru
      _
    %290 = vsyncpa [#allocation3], 1
    %291 = vsyncpa [#allocation6], 1
    %292 = vsyncpa [#allocation4], 1

</llo_original>
